<compile_context>
chip_gen: v7x
topology: tpu7x:2x2x1
jax: 0.10.0
libtpu: 0.0.40
codegen_flags: <defaults>
</compile_context>

<pallas_src>
import jax
import jax.numpy as jnp
from jax import lax
from jax.experimental import pallas as pl
from jax.experimental.pallas import tpu as pltpu


def _make_mhsa_kernel(C, d, N, Np, cdtype):
    """Builds the fused MHSA kernel for static sizes C, d, N, Np."""

    def kernel(x_ref, wqkv_ref, bqkv_ref, o_ref, qkv_ref):
        # x_ref    : (1, C, Np)  one image (resident across the head axis)
        # wqkv_ref : (3C, C)     stacked q/k/v 1x1-conv weights (grid-resident)
        # bqkv_ref : (3C, 1)     stacked biases, f32 (grid-resident)
        # o_ref    : (1, d, Np)  this head's output channel group
        # qkv_ref  : (3C, Np)    f32 scratch holding the fused projection
        h = pl.program_id(1)

        # Fused QKV projection once per image (h == 0): one wide MXU matmul
        # instead of 3*heads skinny (d, C)@(C, Np) matmuls.
        @pl.when(h == 0)
        def _():
            x = x_ref[0]                                            # (C, Np) native dtype
            qkv_ref[...] = (
                jnp.dot(wqkv_ref[...], x, preferred_element_type=jnp.float32)
                + bqkv_ref[...])                                    # bias broadcast over Np

        # Per-head (d, Np) slices of the resident projection (d % 8 == 0).
        q = qkv_ref[pl.ds(pl.multiple_of(h * d, 8), d), :]
        k = qkv_ref[pl.ds(pl.multiple_of(h * d + C, 8), d), :]
        v = qkv_ref[pl.ds(pl.multiple_of(h * d + 2 * C, 8), d), :]

        # energy[n, m] = sum_c q[c, n] * k[c, m]  (== q^T k, no transpose copy).
        # Operands in the input's native dtype; f32 accumulation on the MXU.
        energy = lax.dot_general(q.astype(cdtype), k.astype(cdtype),
                                 (((0,), (0,)), ((), ())),
                                 preferred_element_type=jnp.float32)   # (Np, Np)

        if Np != N:  # mask padded key columns out of the softmax
            col = lax.broadcasted_iota(jnp.int32, (Np, Np), 1)
            energy = jnp.where(col < N, energy, jnp.float32(-1e30))

        # Softmax over keys (matches nn.Softmax(dim=-1)); the divide is folded
        # into an EUP reciprocal + VPU multiply.
        m = jnp.max(energy, axis=-1, keepdims=True)
        p = jnp.exp(energy - m)
        l = jnp.sum(p, axis=-1, keepdims=True)
        attn = p * pl.reciprocal(l, approx=True)                       # (Np, Np)

        # out[c, n] = sum_m v[c, m] * attn[n, m]   (== v @ attn^T)
        out = lax.dot_general(v.astype(cdtype), attn.astype(cdtype),
                              (((1,), (1,)), ((), ())),
                              preferred_element_type=jnp.float32)      # (d, Np)
        o_ref[0] = out.astype(o_ref.dtype)

    return kernel


def mhsa(x, wq, bq, wk, bk, wv, bv, *, heads=4):
    # TODO(synk): pos_emb=True relative-position branch not implemented
    # (module default is pos_emb=False).
    B, C, H, W = x.shape
    assert C % heads == 0, "n_dims must be divisible by heads"
    d = C // heads
    N = H * W
    itemsize = jnp.dtype(x.dtype).itemsize
    sublane = 8 * 4 // itemsize                      # 8 for f32, 16 for bf16
    assert d % sublane == 0, (
        f"C//heads={d} must be a multiple of {sublane} for {x.dtype} tiling")

    Np = ((N + 127) // 128) * 128                    # lane-dense spatial dim

    xf = x.reshape(B, C, N)                          # row-major contiguous view
    if Np != N:
        xf = jnp.pad(xf, ((0, 0), (0, 0), (0, Np - N)))

    # Stack q/k/v projections: one (3C, C) weight -> single fused MXU matmul,
    # and the weights/bias are DMA'd exactly once for the whole grid.
    wqkv = jnp.concatenate([wq, wk, wv], axis=0).astype(x.dtype)          # (3C, C)
    bqkv = jnp.concatenate([bq, bk, bv], axis=0).reshape(3 * C, 1)
    bqkv = bqkv.astype(jnp.float32)                                       # (3C, 1)

    cost = pl.CostEstimate(
        flops=2 * B * 3 * C * C * Np + 4 * B * C * Np * Np,
        transcendentals=B * heads * Np * Np,
        bytes_accessed=(2 * B * C * Np + 3 * C * C) * itemsize + 3 * C * 4,
    )

    # Working-set estimate -> explicit VMEM limit (default scoped limit differs
    # per chip; v7x has only 64 MiB physical per TC).
    est = (2 * C * Np * itemsize                 # x (double-buffered)
           + 3 * C * Np * 4                      # fused QKV scratch (f32)
           + 3 * Np * Np * 4                     # energy / p / attn intermediates
           + 2 * d * Np * itemsize               # output (double-buffered)
           + 3 * C * C * itemsize + 3 * C * 4)   # weights + bias
    vmem_limit = int(max(32 << 20, min(64 << 20, 2 * est)))

    kernel = _make_mhsa_kernel(C, d, N, Np, x.dtype)

    out = pl.pallas_call(
        kernel,
        out_shape=jax.ShapeDtypeStruct((B, C, Np), x.dtype),
        grid_spec=pltpu.PrefetchScalarGridSpec(
            num_scalar_prefetch=0,
            grid=(B, heads),                                   # batch outer, heads inner
            in_specs=[
                pl.BlockSpec((1, C, Np), lambda b, h: (b, 0, 0)),   # x: one DMA per image
                pl.BlockSpec((3 * C, C), lambda b, h: (0, 0)),      # weights: one DMA total
                pl.BlockSpec((3 * C, 1), lambda b, h: (0, 0)),      # bias:    one DMA total
            ],
            out_specs=pl.BlockSpec((1, d, Np), lambda b, h: (b, h, 0)),
            scratch_shapes=[pltpu.VMEM((3 * C, Np), jnp.float32)],
        ),
        compiler_params=pltpu.CompilerParams(
            dimension_semantics=("parallel", "arbitrary"),
            vmem_limit_bytes=vmem_limit),
        cost_estimate=cost,
    )(xf, wqkv, bqkv)

    if Np != N:
        out = out[:, :, :N]
    return out.reshape(B, C, H, W)


def mhsa_ref(x, wq, bq, wk, bk, wv, bv, *, heads=4):
    # Pure-JAX reference mirroring the PyTorch forward exactly (pos_emb=False).
    B, C, H, W = x.shape
    d = C // heads
    N = H * W
    xf = x.reshape(B, C, N)
    q = (jnp.einsum('oc,bcn->bon', wq, xf) + bq[None, :, None]).reshape(B, heads, d, N)
    k = (jnp.einsum('oc,bcn->bon', wk, xf) + bk[None, :, None]).reshape(B, heads, d, N)
    v = (jnp.einsum('oc,bcn->bon', wv, xf) + bv[None, :, None]).reshape(B, heads, d, N)
    energy = jnp.einsum('bhdn,bhdm->bhnm', q, k)            # q^T k
    attn = jax.nn.softmax(energy, axis=-1)
    out = jnp.einsum('bhdm,bhnm->bhdn', v, attn)            # v attn^T
    return out.reshape(B, C, H, W)


if __name__ == "__main__":
    key = jax.random.PRNGKey(0)
    B, C, H, W, heads = 2, 32, 8, 8, 4
    kx, kq, kbq, kk, kbk, kv, kbv = jax.random.split(key, 7)
    scale = 1.0 / (C ** 0.5)
    x = jax.random.normal(kx, (B, C, H, W), dtype=jnp.float32)
    wq = jax.random.normal(kq, (C, C), dtype=jnp.float32) * scale
    bq = jax.random.normal(kbq, (C,), dtype=jnp.float32) * scale
    wk = jax.random.normal(kk, (C, C), dtype=jnp.float32) * scale
    bk = jax.random.normal(kbk, (C,), dtype=jnp.float32) * scale
    wv = jax.random.normal(kv, (C, C), dtype=jnp.float32) * scale
    bv = jax.random.normal(kbv, (C,), dtype=jnp.float32) * scale

    out = mhsa(x, wq, bq, wk, bk, wv, bv, heads=heads)
    out = jax.block_until_ready(out)

    ref = mhsa_ref(x, wq, bq, wk, bk, wv, bv, heads=heads)
    assert out.shape == (B, C, H, W)
    err = jnp.max(jnp.abs(out - ref))
    # Tolerance relaxed slightly vs pure-f32: pl.reciprocal(approx=True) in the
    # softmax normalization is an EUP approximation.
    assert jnp.allclose(out, ref, rtol=5e-3, atol=5e-3), \
        f"mismatch vs reference (max abs err {err})"
    print("KERNEL_OK")
</pallas_src>

<mosaic_0001>
module attributes {stable_mosaic.version = 11 : i64} {
  func.func @kernel(%arg0: i32, %arg1: i32, %arg2: memref<1x32x128xf32, #tpu.memory_space<vmem>>, %arg3: memref<96x32xf32, #tpu.memory_space<vmem>>, %arg4: memref<96x1xf32, #tpu.memory_space<vmem>>, %arg5: memref<1x8x128xf32, #tpu.memory_space<vmem>>, %arg6: memref<96x128xf32, #tpu.memory_space<vmem>>) attributes {dimension_semantics = [#tpu.dimension_semantics<parallel>, #tpu.dimension_semantics<arbitrary>], iteration_bounds = array<i64: 2, 4>, scalar_prefetch = 0 : i64, scratch_operands = 1 : i64, tpu.core_type = #tpu.core_type<tc>, window_params = [{transform_indices = @transform_0, window_bounds = array<i64: 1, 32, 128>}, {pipeline_mode = #tpu.pipeline_mode<synchronous>, transform_indices = @transform_1, window_bounds = array<i64: 96, 32>}, {pipeline_mode = #tpu.pipeline_mode<synchronous>, transform_indices = @transform_2, window_bounds = array<i64: 96, 1>}, {transform_indices = @transform_3, window_bounds = array<i64: 1, 8, 128>}]} {
    %c0_i32 = arith.constant 0 : i32
    %0 = arith.cmpi eq, %arg1, %c0_i32 : i32
    %1 = arith.extui %0 : i1 to i32
    %c0_i32_0 = arith.constant 0 : i32
    %2 = arith.cmpi ne, %1, %c0_i32_0 : i32
    scf.if %2 {
      %c0_13 = arith.constant 0 : index
      %c0_14 = arith.constant 0 : index
      %c0_15 = arith.constant 0 : index
      %37 = vector.load %arg2[%c0_13, %c0_14, %c0_15] : memref<1x32x128xf32, #tpu.memory_space<vmem>>, vector<1x32x128xf32>
      %38 = vector.shape_cast %37 : vector<1x32x128xf32> to vector<32x128xf32>
      %c0_16 = arith.constant 0 : index
      %c0_17 = arith.constant 0 : index
      %39 = vector.load %arg3[%c0_16, %c0_17] : memref<96x32xf32, #tpu.memory_space<vmem>>, vector<96x32xf32>
      %cst_18 = arith.constant dense<0.000000e+00> : vector<96x128xf32>
      %40 = tpu.matmul %39, %38, %cst_18 {dimension_numbers = #tpu.dot_dimension_numbers<[1], [0], [0], [1], [0, 0, 1, 1], [], []>} : vector<96x32xf32>, vector<32x128xf32>, vector<96x128xf32> -> vector<96x128xf32>
      %c0_19 = arith.constant 0 : index
      %c0_20 = arith.constant 0 : index
      %41 = vector.load %arg4[%c0_19, %c0_20] : memref<96x1xf32, #tpu.memory_space<vmem>>, vector<96x1xf32>
      %42 = vector.broadcast %41 : vector<96x1xf32> to vector<96x128xf32>
      %43 = arith.addf %40, %42 : vector<96x128xf32>
      %c0_21 = arith.constant 0 : index
      %c0_22 = arith.constant 0 : index
      %44 = vector.load %arg6[%c0_21, %c0_22] : memref<96x128xf32, #tpu.memory_space<vmem>>, vector<96x128xf32>
      tpu.vector_store %arg6[%c0_21, %c0_22], %43 {strides = array<i32>} : memref<96x128xf32, #tpu.memory_space<vmem>>, vector<96x128xf32>,
    } else {
    }
    %c8_i32 = arith.constant 8 : i32
    %3 = arith.muli %arg1, %c8_i32 : i32
    %4 = tpu.assume_multiple %3, 8 : i32
    %5 = arith.index_cast %4 : i32 to index
    %c0 = arith.constant 0 : index
    %6 = vector.load %arg6[%5, %c0] : memref<96x128xf32, #tpu.memory_space<vmem>>, vector<8x128xf32>
    %c8_i32_1 = arith.constant 8 : i32
    %7 = arith.muli %arg1, %c8_i32_1 : i32
    %c32_i32 = arith.constant 32 : i32
    %8 = arith.addi %7, %c32_i32 : i32
    %9 = tpu.assume_multiple %8, 8 : i32
    %10 = arith.index_cast %9 : i32 to index
    %c0_2 = arith.constant 0 : index
    %11 = vector.load %arg6[%10, %c0_2] : memref<96x128xf32, #tpu.memory_space<vmem>>, vector<8x128xf32>
    %c8_i32_3 = arith.constant 8 : i32
    %12 = arith.muli %arg1, %c8_i32_3 : i32
    %c64_i32 = arith.constant 64 : i32
    %13 = arith.addi %12, %c64_i32 : i32
    %14 = tpu.assume_multiple %13, 8 : i32
    %15 = arith.index_cast %14 : i32 to index
    %c0_4 = arith.constant 0 : index
    %16 = vector.load %arg6[%15, %c0_4] : memref<96x128xf32, #tpu.memory_space<vmem>>, vector<8x128xf32>
    %cst = arith.constant dense<0.000000e+00> : vector<128x128xf32>
    %17 = tpu.matmul %6, %11, %cst {dimension_numbers = #tpu.dot_dimension_numbers<[0], [0], [1], [1], [0, 1, 1, 1], [], []>} : vector<8x128xf32>, vector<8x128xf32>, vector<128x128xf32> -> vector<128x128xf32>
    %18 = tpu.iota {dimensions = array<i32: 1>} : vector<128x128xi32>
    %c64_i32_5 = arith.constant 64 : i32
    %19 = vector.broadcast %c64_i32_5 : i32 to vector<128x128xi32>
    %20 = arith.cmpi slt, %18, %19 : vector<128x128xi32>
    %cst_6 = arith.constant -1.000000e+30 : f32
    %21 = vector.broadcast %cst_6 : f32 to vector<128x128xf32>
    %22 = arith.select %20, %17, %21 : vector<128x128xi1>, vector<128x128xf32>
    %cst_7 = arith.constant dense<0xFF800000> : vector<128xf32>
    %23 = vector.multi_reduction <maximumf>, %22, %cst_7 [1] : vector<128x128xf32> to vector<128xf32>
    %24 = vector.shape_cast %23 : vector<128xf32> to vector<128x1xf32>
    %25 = vector.broadcast %24 : vector<128x1xf32> to vector<128x128xf32>
    %26 = arith.subf %22, %25 : vector<128x128xf32>
    %27 = math.exp %26 : vector<128x128xf32>
    %cst_8 = arith.constant dense<0.000000e+00> : vector<128xf32>
    %28 = vector.multi_reduction <add>, %27, %cst_8 [1] : vector<128x128xf32> to vector<128xf32>
    %29 = vector.shape_cast %28 : vector<128xf32> to vector<128x1xf32>
    %30 = tpu.reciprocal %29 {approx = true} : vector<128x1xf32> -> vector<128x1xf32>
    %31 = vector.broadcast %30 : vector<128x1xf32> to vector<128x128xf32>
    %32 = arith.mulf %27, %31 : vector<128x128xf32>
    %cst_9 = arith.constant dense<0.000000e+00> : vector<8x128xf32>
    %33 = tpu.matmul %16, %32, %cst_9 {dimension_numbers = #tpu.dot_dimension_numbers<[1], [1], [0], [0], [0, 0, 1, 0], [], []>} : vector<8x128xf32>, vector<128x128xf32>, vector<8x128xf32> -> vector<8x128xf32>
    %c0_10 = arith.constant 0 : index
    %c0_11 = arith.constant 0 : index
    %c0_12 = arith.constant 0 : index
    %34 = vector.load %arg5[%c0_10, %c0_11, %c0_12] : memref<1x8x128xf32, #tpu.memory_space<vmem>>, vector<1x8x128xf32>
    %35 = vector.shape_cast %34 : vector<1x8x128xf32> to vector<8x128xf32>
    %36 = vector.shape_cast %33 : vector<8x128xf32> to vector<1x8x128xf32>
    tpu.vector_store %arg5[%c0_10, %c0_11, %c0_12], %36 {strides = array<i32>} : memref<1x8x128xf32, #tpu.memory_space<vmem>>, vector<1x8x128xf32>,
    return
  }
  func.func @transform_0(%arg0: i32, %arg1: i32) -> (i32, i32, i32) {
    %c0_i32 = arith.constant 0 : i32
    %c0_i32_0 = arith.constant 0 : i32
    %c0_i32_1 = arith.constant 0 : i32
    return %arg0, %c0_i32, %c0_i32_0 : i32, i32, i32
  }
  func.func @transform_1(%arg0: i32, %arg1: i32) -> (i32, i32) {
    %c0_i32 = arith.constant 0 : i32
    %c0_i32_0 = arith.constant 0 : i32
    %c0_i32_1 = arith.constant 0 : i32
    return %c0_i32, %c0_i32_0 : i32, i32
  }
  func.func @transform_2(%arg0: i32, %arg1: i32) -> (i32, i32) {
    %c0_i32 = arith.constant 0 : i32
    %c0_i32_0 = arith.constant 0 : i32
    %c0_i32_1 = arith.constant 0 : i32
    return %c0_i32, %c0_i32_0 : i32, i32
  }
  func.func @transform_3(%arg0: i32, %arg1: i32) -> (i32, i32, i32) {
    %c0_i32 = arith.constant 0 : i32
    %c0_i32_0 = arith.constant 0 : i32
    return %arg0, %arg1, %c0_i32 : i32, i32, i32
  }
}

</mosaic_0001>

<llo_original>
// kernel: tpu_custom_call.1
$region0: #{tpu_custom_call.1}
  #allocation0 [shape = 'u32[]', space=smem, size = 0x4, offset = 0x4, fixed_abs, tag = 'smem constant byte address 0x4 - core index']
  #allocation1 [shape = 'u32[144,128]{1,0:T(1,128)}', space=vmem, size = 0x12000, scoped, tag = 'internal scratch']
  #allocation2 [shape = 'f32[96,128]{1,0:T(8,128)}', space=vmem, size = 0xc000, scoped, tag = 'scratch operand']
  %s0 = inlined_call_operand.vmem [shape: f32[2,32,128], index: 0, kind: input, shape index: {}]
  %s1 = inlined_call_operand.vmem [shape: f32[96,32], index: 1, kind: input, shape index: {}]
  %s2 = inlined_call_operand.vmem [shape: f32[96,1], index: 2, kind: input, shape index: {}]
  %s3 = inlined_call_operand.hbm [shape: f32[2,32,128], index: 3, kind: output, shape index: {}]
  %s4 = sld [smem:[#allocation0]]
  $region49: #{tpu_custom_call.1} parent=0
    _
  %s6 = ssub.s32 1, %s4
  %s7 = scalar_select 0, %s6, %s4
  $region1: #{tpu_custom_call.1} parent=0
    #allocation3 [shape = 'u8[8192]{0}', space=vmem, size = 0x2000, scoped, tag = 'output window, operand 0']
    #allocation4 [shape = 's32[2]{0}', space=sflag, size = 0x8, scoped, tag = 'scoped memory for tpu_custom_call.1']
    %8 = vsyncpa [#allocation4], 0
    %s9 = scalar_lea.sflag [#allocation4], 1
    %10 = vsyncpa %s9, 0
    loop: start=0, step=1, limit=10
    $region2: #{tpu_custom_call.1} parent=1 // loop_pre_header
      _
    $region3: #{tpu_custom_call.1} parent=1 // loop_header
      %s12 = sphi 0, %s16
      %p13 = scmp.ge.s32.totalorder %s12, 10
      %s19 = sphi 0, %s31
      %s20 = sphi 0, %s27
      %s21 = sphi 0, %s19
      %s22 = sphi 0, %s20
      %s23 = sphi 0, %s21
      %s24 = sphi 0, %s22
      %s34 = sphi 0, %s36
      %s37 = sphi 0, %s34
      %s38 = sphi 0, %s37
      %s54 = sphi 0, %s38
      %s58 = sphi 0, %s58
      %s60 = sphi 0, %s58
      %s61 = sphi 0, %s60
      %s75 = sphi 0, %s61
      %s79 = sphi 0, %s79
      %s81 = sphi 0, %s79
      %s82 = sphi 0, %s81
      %s96 = sphi 0, %s82
      %s104 = sphi 0, %s106
      %s107 = sphi 0, %s104
      %s108 = sphi 0, %s107
      %s124 = sphi 0, %s108
    $region4: #{tpu_custom_call.1} parent=1 // loop_header_branch
      %15 = sbr.rel (%p13) target = $region8
    $region5: #{tpu_custom_call.1} parent=1 // loop_body
      %s17 = ssub.s32 %s12, 1
      %s18 = ssub.s32 %s12, 2
      %s25 = sadd.s32 1, %s20
      %p26 = scmp.ge.s32.totalorder %s25, 4
      %s27 = scalar_select %p26, 0, %s25
      %s28 = sadd.s32 1, %s19
      %s29 = scalar_select %p26, %s28, %s19
      %p30 = scmp.ge.s32.totalorder %s29, 2
      %s31 = scalar_select %p30, 0, %s29
      %s32 = ssub.s32 %s19, %s31
      %p33 = scmp.eq.s32.totalorder %s32, 0
      %s35 = sadd.s32 %s34, 1
      %s36 = scalar_select %p33, %s34, %s35
      %p39 = pneg %p33
      %p40 = scmp.eq.s32.totalorder %s12, 7
      %p41 = por %p39, %p40
      %p42 = scmp.ne.s32.totalorder %s34, %s37
      %p43 = scmp.eq.s32.totalorder %s12, 0
      %p44 = por %p42, %p43
      %p45 = scmp.ne.s32.totalorder %s34, %s37
      %p46 = scmp.eq.s32.totalorder %s17, 7
      %p47 = por %p45, %p46
      %p48 = scmp.ne.s32.totalorder %s37, %s38
      %p49 = scmp.eq.s32.totalorder %s17, 0
      %p50 = por %p48, %p49
      %p51 = scmp.ne.s32.totalorder %s37, %s38
      %p52 = scmp.eq.s32.totalorder %s18, 7
      %p53 = por %p51, %p52
      %p55 = scmp.ne.s32.totalorder %s38, %s54
      %p56 = scmp.eq.s32.totalorder %s18, 0
      %p57 = por %p55, %p56
      %s59 = sadd.s32 %s58, 1
      %p62 = scmp.eq.s32.totalorder %s12, 7
      %p63 = scmp.ne.s32.totalorder %s58, %s60
      %p64 = scmp.eq.s32.totalorder %s12, 0
      %p65 = por %p63, %p64
      %p66 = scmp.ne.s32.totalorder %s58, %s60
      %p67 = scmp.eq.s32.totalorder %s17, 7
      %p68 = por %p66, %p67
      %p69 = scmp.ne.s32.totalorder %s60, %s61
      %p70 = scmp.eq.s32.totalorder %s17, 0
      %p71 = por %p69, %p70
      %p72 = scmp.ne.s32.totalorder %s60, %s61
      %p73 = scmp.eq.s32.totalorder %s18, 7
      %p74 = por %p72, %p73
      %p76 = scmp.ne.s32.totalorder %s61, %s75
      %p77 = scmp.eq.s32.totalorder %s18, 0
      %p78 = por %p76, %p77
      %s80 = sadd.s32 %s79, 1
      %p83 = scmp.eq.s32.totalorder %s12, 7
      %p84 = scmp.ne.s32.totalorder %s79, %s81
      %p85 = scmp.eq.s32.totalorder %s12, 0
      %p86 = por %p84, %p85
      %p87 = scmp.ne.s32.totalorder %s79, %s81
      %p88 = scmp.eq.s32.totalorder %s17, 7
      %p89 = por %p87, %p88
      %p90 = scmp.ne.s32.totalorder %s81, %s82
      %p91 = scmp.eq.s32.totalorder %s17, 0
      %p92 = por %p90, %p91
      %p93 = scmp.ne.s32.totalorder %s81, %s82
      %p94 = scmp.eq.s32.totalorder %s18, 7
      %p95 = por %p93, %p94
      %p97 = scmp.ne.s32.totalorder %s82, %s96
      %p98 = scmp.eq.s32.totalorder %s18, 0
      %p99 = por %p97, %p98
      %s100 = ssub.s32 %s19, %s31
      %s101 = ssub.s32 %s20, %s27
      %s102 = sor.u32 %s100, %s101
      %p103 = scmp.eq.s32.totalorder %s102, 0
      %s105 = sadd.s32 %s104, 1
      %s106 = scalar_select %p103, %s104, %s105
      %p109 = pneg %p103
      %p110 = scmp.eq.s32.totalorder %s12, 7
      %p111 = por %p109, %p110
      %p112 = scmp.ne.s32.totalorder %s104, %s107
      %p113 = scmp.eq.s32.totalorder %s12, 0
      %p114 = por %p112, %p113
      %p115 = scmp.ne.s32.totalorder %s104, %s107
      %p116 = scmp.eq.s32.totalorder %s17, 7
      %p117 = por %p115, %p116
      %p118 = scmp.ne.s32.totalorder %s107, %s108
      %p119 = scmp.eq.s32.totalorder %s17, 0
      %p120 = por %p118, %p119
      %p121 = scmp.ne.s32.totalorder %s107, %s108
      %p122 = scmp.eq.s32.totalorder %s18, 7
      %p123 = por %p121, %p122
      %p125 = scmp.ne.s32.totalorder %s108, %s124
      %p126 = scmp.eq.s32.totalorder %s18, 0
      %p127 = por %p125, %p126
      %p128 = scmp.le.s32.totalorder 1, %s12
      %p129 = scmp.lt.s32.totalorder %s12, 9
      %p130 = pnand %p128, %p129
      %p131 = pneg %p130
      // Predicated region
      $region9: #{tpu_custom_call.1} parent=5 // pred_check
        _
      $region10: #{tpu_custom_call.1} parent=5 // pred_check_branch
        %133 = sbr.rel (%p130) target = $region12
      $region11: #{tpu_custom_call.1} parent=5 // pred_region
        %s134 = ssub.s32 %s12, 1
        // Predicated region
        $region13: #{tpu_custom_call.1} parent=11 // pred_check
          %p135 = pneg %p71
        $region14: #{tpu_custom_call.1} parent=11 // pred_check_branch
          %137 = sbr.rel (%p135) target = $region16
        $region15: #{tpu_custom_call.1} parent=11 // pred_region
          _
        $region16: #{tpu_custom_call.1} parent=11 // pred_fallthru
          _
        // Predicated region
        $region17: #{tpu_custom_call.1} parent=11 // pred_check
          %p138 = pneg %p92
        $region18: #{tpu_custom_call.1} parent=11 // pred_check_branch
          %140 = sbr.rel (%p138) target = $region20
        $region19: #{tpu_custom_call.1} parent=11 // pred_region
          _
        $region20: #{tpu_custom_call.1} parent=11 // pred_fallthru
          _
      $region12: #{tpu_custom_call.1} parent=5 // pred_fallthru
        _
      %p141 = scmp.lt.s32.totalorder %s12, 8
      // Predicated region
      $region21: #{tpu_custom_call.1} parent=5 // pred_check
        %p142 = pneg %p141
      $region22: #{tpu_custom_call.1} parent=5 // pred_check_branch
        %144 = sbr.rel (%p142) target = $region24
      $region23: #{tpu_custom_call.1} parent=5 // pred_region
        // Predicated region
        $region25: #{tpu_custom_call.1} parent=23 // pred_check
          %p145 = pneg %p44
        $region26: #{tpu_custom_call.1} parent=23 // pred_check_branch
          %147 = sbr.rel (%p145) target = $region28
        $region27: #{tpu_custom_call.1} parent=23 // pred_region
          %p148 = scmp.lt.s32.totalorder %s19, 1
          %s149 = scalar_select %p148, %s19, 1
          %s150 = smul.addr %s149, 4
          %s151 = smul.addr %s150, 8
          %s152 = scalar_lea.vmem %s0, %s151
        $region28: #{tpu_custom_call.1} parent=23 // pred_fallthru
          _
      $region24: #{tpu_custom_call.1} parent=5 // pred_fallthru
        _
      %p153 = scmp.le.s32.totalorder 1, %s12
      %p154 = scmp.lt.s32.totalorder %s12, 9
      %p155 = pnand %p153, %p154
      %p156 = pneg %p155
      // Predicated region
      $region29: #{tpu_custom_call.1} parent=5 // pred_check
        _
      $region30: #{tpu_custom_call.1} parent=5 // pred_check_branch
        %158 = sbr.rel (%p155) target = $region32
      $region31: #{tpu_custom_call.1} parent=5 // pred_region
        %s159 = ssub.s32 %s12, 1
        %p160 = scmp.lt.s32.totalorder %s21, 1
        %s161 = scalar_select %p160, %s21, 1
        %s162 = smul.addr %s161, 4
        %s163 = smul.addr %s162, 8
        %s164 = scalar_lea.vmem %s0, %s163
        %p165 = pneg %p50
        %p166 = pneg %p47
        %p167 = pneg %p71
        %p168 = pneg %p68
        %p169 = pneg %p92
        %p170 = pneg %p89
        %p171 = pneg %p120
        %p172 = pneg %p117
        %s173 = sand.u32 %s107, 1
        %s174 = scalar_lea.sflag [#allocation4], %s173
        %s175 = sand.u32 %s107, 1
        %s176 = smul.addr %s175, 8
        %s177 = scalar_lea.vmem [#allocation3], %s176
        %p178 = scmp.lt.s32.totalorder %s21, 1
        %s179 = scalar_select %p178, %s21, 1
        %s180 = smul.addr %s179, 4
        %s181 = smul.addr %s180, 8
        %s182 = scalar_lea.vmem %s0, %s181
        %p183 = scmp.eq.s32.totalorder %s22, 0
        // Predicated region
        $region33: #{tpu_custom_call.1} parent=31 // pred_check
          %p184 = pneg %p183
        $region34: #{tpu_custom_call.1} parent=31 // pred_check_branch
          %186 = sbr.rel (%p184) target = $region36
        $region35: #{tpu_custom_call.1} parent=31 // pred_region
          %v187 = vld [vmem:[%s182] sm:$0xff]
          %v188 = vld [vmem:[%s182 + $0x8] sm:$0xff]
          %v189 = vld [vmem:[%s182 + $0x10] sm:$0xff]
          %v190 = vld [vmem:[%s182 + $0x18] sm:$0xff]
          %v191 = vld [vmem:[%s1] sm:$0xff]
          %v192 = vld [vmem:[%s1 + $0x8] sm:$0xff]
          %v193 = vld [vmem:[%s1 + $0x10] sm:$0xff]
          %v194 = vld [vmem:[%s1 + $0x18] sm:$0xff]
          %v195 = vld [vmem:[%s1 + $0x20] sm:$0xff]
          %v196 = vld [vmem:[%s1 + $0x28] sm:$0xff]
          %v197 = vld [vmem:[%s1 + $0x30] sm:$0xff]
          %v198 = vld [vmem:[%s1 + $0x38] sm:$0xff]
          %v199 = vld [vmem:[%s1 + $0x40] sm:$0xff]
          %v200 = vld [vmem:[%s1 + $0x48] sm:$0xff]
          %v201 = vld [vmem:[%s1 + $0x50] sm:$0xff]
          %v202 = vld [vmem:[%s1 + $0x58] sm:$0xff]
          %v203 = vld [vmem:[%s2] sm:$0xff]
          %v204 = vld [vmem:[%s2 + $0x8] sm:$0xff]
          %v205 = vld [vmem:[%s2 + $0x10] sm:$0xff]
          %v206 = vld [vmem:[%s2 + $0x18] sm:$0xff]
          %v207 = vld [vmem:[%s2 + $0x20] sm:$0xff]
          %v208 = vld [vmem:[%s2 + $0x28] sm:$0xff]
          %v209 = vld [vmem:[%s2 + $0x30] sm:$0xff]
          %v210 = vld [vmem:[%s2 + $0x38] sm:$0xff]
          %v211 = vld [vmem:[%s2 + $0x40] sm:$0xff]
          %v212 = vld [vmem:[%s2 + $0x48] sm:$0xff]
          %v213 = vld [vmem:[%s2 + $0x50] sm:$0xff]
          %v214 = vld [vmem:[%s2 + $0x58] sm:$0xff]
          %216 = vset.pattern.permute.xlu0 0
          %217 = vperm.xlu0 %216, %v203
          %v218 = vpop.permute.xlu0 %217
          %221 = vset.pattern.permute.xlu0 0
          %222 = vperm.xlu0 %221, %v204
          %v223 = vpop.permute.xlu0 %222
          %226 = vset.pattern.permute.xlu0 0
          %227 = vperm.xlu0 %226, %v205
          %v228 = vpop.permute.xlu0 %227
          %231 = vset.pattern.permute.xlu0 0
          %232 = vperm.xlu0 %231, %v206
          %v233 = vpop.permute.xlu0 %232
          %236 = vset.pattern.permute.xlu0 0
          %237 = vperm.xlu0 %236, %v207
          %v238 = vpop.permute.xlu0 %237
          %241 = vset.pattern.permute.xlu0 0
          %242 = vperm.xlu0 %241, %v208
          %v243 = vpop.permute.xlu0 %242
          %246 = vset.pattern.permute.xlu0 0
          %247 = vperm.xlu0 %246, %v209
          %v248 = vpop.permute.xlu0 %247
          %251 = vset.pattern.permute.xlu0 0
          %252 = vperm.xlu0 %251, %v210
          %v253 = vpop.permute.xlu0 %252
          %256 = vset.pattern.permute.xlu0 0
          %257 = vperm.xlu0 %256, %v211
          %v258 = vpop.permute.xlu0 %257
          %261 = vset.pattern.permute.xlu0 0
          %262 = vperm.xlu0 %261, %v212
          %v263 = vpop.permute.xlu0 %262
          %266 = vset.pattern.permute.xlu0 0
          %267 = vperm.xlu0 %266, %v213
          %v268 = vpop.permute.xlu0 %267
          %271 = vset.pattern.permute.xlu0 0
          %272 = vperm.xlu0 %271, %v214
          %v273 = vpop.permute.xlu0 %272
          %vm275 = vcmask 261120
          %v277 = vsel %vm275, %v191, 0
          %v280 = vsel %vm275, %v192, 0
          %v283 = vsel %vm275, %v193, 0
          %v286 = vsel %vm275, %v194, 0
          %v289 = vsel %vm275, %v195, 0
          %v292 = vsel %vm275, %v196, 0
          %v295 = vsel %vm275, %v197, 0
          %v298 = vsel %vm275, %v198, 0
          %v301 = vsel %vm275, %v199, 0
          %v304 = vsel %vm275, %v200, 0
          %v307 = vsel %vm275, %v201, 0
          %v310 = vsel %vm275, %v202, 0
          %312 = vmatprep.subr.mxu0 0.0
          %313 = vmatpush1.msra.mxu0 %v187
          %314 = vmatprep.subr.mxu0 0.0
          %315 = vmatpush1.msra.mxu0 %v188
          %316 = vmatprep.subr.mxu0 0.0
          %317 = vmatpush1.msra.mxu0 %v189
          %318 = vmatprep.subr.mxu0 0.0
          %319 = vmatpush1.msra.mxu0 %v190
          %320 = vmatprep.subr.mxu0 0.0
          %321 = vmatpush1.msra.mxu0 0.0
          %322 = vmatprep.subr.mxu0 0.0
          %323 = vmatpush1.msra.mxu0 0.0
          %324 = vmatprep.subr.mxu0 0.0
          %325 = vmatpush1.msra.mxu0 0.0
          %326 = vmatprep.subr.mxu0 0.0
          %327 = vmatpush1.msra.mxu0 0.0
          %328 = vmatprep.subr.mxu0 0.0
          %329 = vmatpush1.msra.mxu0 0.0
          %330 = vmatprep.subr.mxu0 0.0
          %331 = vmatpush1.msra.mxu0 0.0
          %332 = vmatprep.subr.mxu0 0.0
          %333 = vmatpush1.msra.mxu0 0.0
          %334 = vmatprep.subr.mxu0 0.0
          %335 = vmatpush1.msra.mxu0 0.0
          %336 = vmatprep.subr.mxu0 0.0
          %337 = vmatpush1.msra.mxu0 0.0
          %338 = vmatprep.subr.mxu0 0.0
          %339 = vmatpush1.msra.mxu0 0.0
          %340 = vmatprep.subr.mxu0 0.0
          %341 = vmatpush1.msra.mxu0 0.0
          %342 = vmatprep.subr.mxu0 0.0
          %343 = vmatpush1.msra.mxu0 0.0
          %344 = vmatprep.subr.mxu0 0.0
          %345 = vmatpush1.msra.mxu0 0.0
          %346 = vmatprep.subr.mxu0 0.0
          %347 = vmatpush1.msra.mxu0 0.0
          %348 = vmatprep.subr.mxu0 0.0
          %349 = vmatpush1.msra.mxu0 0.0
          %350 = vmatprep.subr.mxu0 0.0
          %351 = vmatpush1.msra.mxu0 0.0
          %352 = vmatprep.subr.mxu0 0.0
          %353 = vmatpush1.msra.mxu0 0.0
          %354 = vmatprep.subr.mxu0 0.0
          %355 = vmatpush1.msra.mxu0 0.0
          %356 = vmatprep.subr.mxu0 0.0
          %357 = vmatpush1.msra.mxu0 0.0
          %358 = vmatprep.subr.mxu0 0.0
          %359 = vmatpush1.msra.mxu0 0.0
          %360 = vmatprep.subr.mxu0 0.0
          %361 = vmatpush1.msra.mxu0 0.0
          %362 = vmatprep.subr.mxu0 0.0
          %363 = vmatpush1.msra.mxu0 0.0
          %364 = vmatprep.subr.mxu0 0.0
          %365 = vmatpush1.msra.mxu0 0.0
          %366 = vmatprep.subr.mxu0 0.0
          %367 = vmatpush1.msra.mxu0 0.0
          %368 = vmatprep.subr.mxu0 0.0
          %369 = vmatpush1.msra.mxu0 0.0
          %370 = vmatprep.subr.mxu0 0.0
          %371 = vmatpush1.msra.mxu0 0.0
          %372 = vmatprep.subr.mxu0 0.0
          %373 = vmatpush1.msra.mxu0 0.0
          %374 = vmatprep.subr.mxu0 0.0
          %375 = vmatpush1.msra.mxu0 0.0
          %376 = vmatprep.mubr.f32.mxu0 0.0
          %377 = vmatmul.mubr.f32.gmra.mrb[0].mxu0 %v277
          %v378 = vpop.f32.mrb[0].mxu0
          %v379 = vadd.f32 %v218, %v378
          %v380 = vpop.f32.mrb[0].mxu0
          %381 = vmatprep.mubr.f32.mxu0 0.0
          %382 = vmatmul.mubr.f32.gmra.mrb[0].mxu0 %v280
          %v383 = vpop.f32.mrb[0].mxu0
          %v384 = vadd.f32 %v223, %v383
          %v385 = vpop.f32.mrb[0].mxu0
          %386 = vmatprep.mubr.f32.mxu0 0.0
          %387 = vmatmul.mubr.f32.gmra.mrb[0].mxu0 %v283
          %v388 = vpop.f32.mrb[0].mxu0
          %v389 = vadd.f32 %v228, %v388
          %v390 = vpop.f32.mrb[0].mxu0
          %391 = vmatprep.mubr.f32.mxu0 0.0
          %392 = vmatmul.mubr.f32.gmra.mrb[0].mxu0 %v286
          %v393 = vpop.f32.mrb[0].mxu0
          %v394 = vadd.f32 %v233, %v393
          %v395 = vpop.f32.mrb[0].mxu0
          %396 = vmatprep.mubr.f32.mxu0 0.0
          %397 = vmatmul.mubr.f32.gmra.mrb[0].mxu0 %v289
          %v398 = vpop.f32.mrb[0].mxu0
          %v399 = vadd.f32 %v238, %v398
          %v400 = vpop.f32.mrb[0].mxu0
          %401 = vmatprep.mubr.f32.mxu0 0.0
          %402 = vmatmul.mubr.f32.gmra.mrb[0].mxu0 %v292
          %v403 = vpop.f32.mrb[0].mxu0
          %v404 = vadd.f32 %v243, %v403
          %v405 = vpop.f32.mrb[0].mxu0
          %406 = vmatprep.mubr.f32.mxu0 0.0
          %407 = vmatmul.mubr.f32.gmra.mrb[0].mxu0 %v295
          %v408 = vpop.f32.mrb[0].mxu0
          %v409 = vadd.f32 %v248, %v408
          %v410 = vpop.f32.mrb[0].mxu0
          %411 = vmatprep.mubr.f32.mxu0 0.0
          %412 = vmatmul.mubr.f32.gmra.mrb[0].mxu0 %v298
          %v413 = vpop.f32.mrb[0].mxu0
          %v414 = vadd.f32 %v253, %v413
          %v415 = vpop.f32.mrb[0].mxu0
          %416 = vmatprep.mubr.f32.mxu0 0.0
          %417 = vmatmul.mubr.f32.gmra.mrb[0].mxu0 %v301
          %v418 = vpop.f32.mrb[0].mxu0
          %v419 = vadd.f32 %v258, %v418
          %v420 = vpop.f32.mrb[0].mxu0
          %421 = vmatprep.mubr.f32.mxu0 0.0
          %422 = vmatmul.mubr.f32.gmra.mrb[0].mxu0 %v304
          %v423 = vpop.f32.mrb[0].mxu0
          %v424 = vadd.f32 %v263, %v423
          %v425 = vpop.f32.mrb[0].mxu0
          %426 = vmatprep.mubr.f32.mxu0 0.0
          %427 = vmatmul.mubr.f32.gmra.mrb[0].mxu0 %v307
          %v428 = vpop.f32.mrb[0].mxu0
          %v429 = vadd.f32 %v268, %v428
          %v430 = vpop.f32.mrb[0].mxu0
          %431 = vmatprep.mubr.f32.mxu0 0.0
          %432 = vmatmul.mubr.f32.gmra.mrb[0].mxu0 %v310
          %v433 = vpop.f32.mrb[0].mxu0
          %v434 = vadd.f32 %v273, %v433
          %v435 = vpop.f32.mrb[0].mxu0
          %436 = vdwg.mxu0
          %437 = vst [vmem:[#allocation2] sm:$0xff] %v379
          %438 = vst [vmem:[#allocation2 + $0x8] sm:$0xff] %v384
          %439 = vst [vmem:[#allocation2 + $0x10] sm:$0xff] %v389
          %440 = vst [vmem:[#allocation2 + $0x18] sm:$0xff] %v394
          %441 = vst [vmem:[#allocation2 + $0x20] sm:$0xff] %v399
          %442 = vst [vmem:[#allocation2 + $0x28] sm:$0xff] %v404
          %443 = vst [vmem:[#allocation2 + $0x30] sm:$0xff] %v409
          %444 = vst [vmem:[#allocation2 + $0x38] sm:$0xff] %v414
          %445 = vst [vmem:[#allocation2 + $0x40] sm:$0xff] %v419
          %446 = vst [vmem:[#allocation2 + $0x48] sm:$0xff] %v424
          %447 = vst [vmem:[#allocation2 + $0x50] sm:$0xff] %v429
          %448 = vst [vmem:[#allocation2 + $0x58] sm:$0xff] %v434
        $region36: #{tpu_custom_call.1} parent=31 // pred_fallthru
          _
        %s449 = smul.u32 %s22, 8
        %s450 = scalar_lea.vmem [#allocation2], %s449
        %v451 = vld [vmem:[%s450] sm:$0xff]
        %s452 = sadd.s32 %s449, 32
        %s453 = scalar_lea.vmem [#allocation2], %s452
        %v454 = vld [vmem:[%s453] sm:$0xff]
        %s455 = sadd.s32 %s449, 64
        %s456 = scalar_lea.vmem [#allocation2], %s455
        %v457 = vld [vmem:[%s456] sm:$0xff]
        %458 = vxpose.xlu0.b32.start [1/16] %v451, 128
        %459 = vxpose.xlu0.b32.cont [2/16] 0.0, 128
        %460 = vxpose.xlu0.b32.cont [3/16] 0.0, 128
        %461 = vxpose.xlu0.b32.cont [4/16] 0.0, 128
        %462 = vxpose.xlu0.b32.cont [5/16] 0.0, 128
        %463 = vxpose.xlu0.b32.cont [6/16] 0.0, 128
        %464 = vxpose.xlu0.b32.cont [7/16] 0.0, 128
        %465 = vxpose.xlu0.b32.cont [8/16] 0.0, 128
        %466 = vxpose.xlu0.b32.cont [9/16] 0.0, 128
        %467 = vxpose.xlu0.b32.cont [10/16] 0.0, 128
        %468 = vxpose.xlu0.b32.cont [11/16] 0.0, 128
        %469 = vxpose.xlu0.b32.cont [12/16] 0.0, 128
        %470 = vxpose.xlu0.b32.cont [13/16] 0.0, 128
        %471 = vxpose.xlu0.b32.cont [14/16] 0.0, 128
        %472 = vxpose.xlu0.b32.cont [15/16] 0.0, 128
        %473 = vxpose.xlu0.b32.end [16/16] 0.0, 128
        %v474 = vpop.trf.xlu0
        %v475 = vpop.trf.xlu0
        %v476 = vpop.trf.xlu0
        %v477 = vpop.trf.xlu0
        %v478 = vpop.trf.xlu0
        %v479 = vpop.trf.xlu0
        %v480 = vpop.trf.xlu0
        %v481 = vpop.trf.xlu0
        %v482 = vpop.trf.xlu0
        %v483 = vpop.trf.xlu0
        %v484 = vpop.trf.xlu0
        %v485 = vpop.trf.xlu0
        %v486 = vpop.trf.xlu0
        %v487 = vpop.trf.xlu0
        %v488 = vpop.trf.xlu0
        %v489 = vpop.trf.xlu0
        %vm490 = vcmask 64512
        %v492 = vsel %vm490, %v474, 0
        %v495 = vsel %vm490, %v475, 0
        %v498 = vsel %vm490, %v476, 0
        %v501 = vsel %vm490, %v477, 0
        %v504 = vsel %vm490, %v478, 0
        %v507 = vsel %vm490, %v479, 0
        %v510 = vsel %vm490, %v480, 0
        %v513 = vsel %vm490, %v481, 0
        %v516 = vsel %vm490, %v482, 0
        %v519 = vsel %vm490, %v483, 0
        %v522 = vsel %vm490, %v484, 0
        %v525 = vsel %vm490, %v485, 0
        %v528 = vsel %vm490, %v486, 0
        %v531 = vsel %vm490, %v487, 0
        %v534 = vsel %vm490, %v488, 0
        %v537 = vsel %vm490, %v489, 0
        %539 = vmatprep.subr.mxu0 0.0
        %540 = vmatpush1.msra.mxu0 %v454
        %541 = vmatprep.subr.mxu0 0.0
        %542 = vmatpush1.msra.mxu0 0.0
        %543 = vmatprep.subr.mxu0 0.0
        %544 = vmatpush1.msra.mxu0 0.0
        %545 = vmatprep.subr.mxu0 0.0
        %546 = vmatpush1.msra.mxu0 0.0
        %547 = vmatprep.subr.mxu0 0.0
        %548 = vmatpush1.msra.mxu0 0.0
        %549 = vmatprep.subr.mxu0 0.0
        %550 = vmatpush1.msra.mxu0 0.0
        %551 = vmatprep.subr.mxu0 0.0
        %552 = vmatpush1.msra.mxu0 0.0
        %553 = vmatprep.subr.mxu0 0.0
        %554 = vmatpush1.msra.mxu0 0.0
        %555 = vmatprep.subr.mxu0 0.0
        %556 = vmatpush1.msra.mxu0 0.0
        %557 = vmatprep.subr.mxu0 0.0
        %558 = vmatpush1.msra.mxu0 0.0
        %559 = vmatprep.subr.mxu0 0.0
        %560 = vmatpush1.msra.mxu0 0.0
        %561 = vmatprep.subr.mxu0 0.0
        %562 = vmatpush1.msra.mxu0 0.0
        %563 = vmatprep.subr.mxu0 0.0
        %564 = vmatpush1.msra.mxu0 0.0
        %565 = vmatprep.subr.mxu0 0.0
        %566 = vmatpush1.msra.mxu0 0.0
        %567 = vmatprep.subr.mxu0 0.0
        %568 = vmatpush1.msra.mxu0 0.0
        %569 = vmatprep.subr.mxu0 0.0
        %570 = vmatpush1.msra.mxu0 0.0
        %571 = vmatprep.subr.mxu0 0.0
        %572 = vmatpush1.msra.mxu0 0.0
        %573 = vmatprep.subr.mxu0 0.0
        %574 = vmatpush1.msra.mxu0 0.0
        %575 = vmatprep.subr.mxu0 0.0
        %576 = vmatpush1.msra.mxu0 0.0
        %577 = vmatprep.subr.mxu0 0.0
        %578 = vmatpush1.msra.mxu0 0.0
        %579 = vmatprep.subr.mxu0 0.0
        %580 = vmatpush1.msra.mxu0 0.0
        %581 = vmatprep.subr.mxu0 0.0
        %582 = vmatpush1.msra.mxu0 0.0
        %583 = vmatprep.subr.mxu0 0.0
        %584 = vmatpush1.msra.mxu0 0.0
        %585 = vmatprep.subr.mxu0 0.0
        %586 = vmatpush1.msra.mxu0 0.0
        %587 = vmatprep.subr.mxu0 0.0
        %588 = vmatpush1.msra.mxu0 0.0
        %589 = vmatprep.subr.mxu0 0.0
        %590 = vmatpush1.msra.mxu0 0.0
        %591 = vmatprep.subr.mxu0 0.0
        %592 = vmatpush1.msra.mxu0 0.0
        %593 = vmatprep.subr.mxu0 0.0
        %594 = vmatpush1.msra.mxu0 0.0
        %595 = vmatprep.subr.mxu0 0.0
        %596 = vmatpush1.msra.mxu0 0.0
        %597 = vmatprep.subr.mxu0 0.0
        %598 = vmatpush1.msra.mxu0 0.0
        %599 = vmatprep.subr.mxu0 0.0
        %600 = vmatpush1.msra.mxu0 0.0
        %601 = vmatprep.subr.mxu0 0.0
        %602 = vmatpush1.msra.mxu0 0.0
        %603 = vmatprep.mubr.f32.mxu0 0.0
        %604 = vmatmul.mubr.f32.gmra.mrb[0].mxu0 %v492
        %v605 = vpop.f32.mrb[0].mxu0
        %v606 = vadd.f32 0.0, %v605
        %v607 = vpop.f32.mrb[0].mxu0
        %608 = vmatprep.mubr.f32.mxu0 0.0
        %609 = vmatmul.mubr.f32.gmra.mrb[0].mxu0 %v495
        %v610 = vpop.f32.mrb[0].mxu0
        %v611 = vadd.f32 0.0, %v610
        %v612 = vpop.f32.mrb[0].mxu0
        %613 = vmatprep.mubr.f32.mxu0 0.0
        %614 = vmatmul.mubr.f32.gmra.mrb[0].mxu0 %v498
        %v615 = vpop.f32.mrb[0].mxu0
        %v616 = vadd.f32 0.0, %v615
        %v617 = vpop.f32.mrb[0].mxu0
        %618 = vmatprep.mubr.f32.mxu0 0.0
        %619 = vmatmul.mubr.f32.gmra.mrb[0].mxu0 %v501
        %v620 = vpop.f32.mrb[0].mxu0
        %v621 = vadd.f32 0.0, %v620
        %v622 = vpop.f32.mrb[0].mxu0
        %623 = vmatprep.mubr.f32.mxu0 0.0
        %624 = vmatmul.mubr.f32.gmra.mrb[0].mxu0 %v504
        %v625 = vpop.f32.mrb[0].mxu0
        %v626 = vadd.f32 0.0, %v625
        %v627 = vpop.f32.mrb[0].mxu0
        %628 = vmatprep.mubr.f32.mxu0 0.0
        %629 = vmatmul.mubr.f32.gmra.mrb[0].mxu0 %v507
        %v630 = vpop.f32.mrb[0].mxu0
        %v631 = vadd.f32 0.0, %v630
        %v632 = vpop.f32.mrb[0].mxu0
        %633 = vmatprep.mubr.f32.mxu0 0.0
        %634 = vmatmul.mubr.f32.gmra.mrb[0].mxu0 %v510
        %v635 = vpop.f32.mrb[0].mxu0
        %v636 = vadd.f32 0.0, %v635
        %v637 = vpop.f32.mrb[0].mxu0
        %638 = vmatprep.mubr.f32.mxu0 0.0
        %639 = vmatmul.mubr.f32.gmra.mrb[0].mxu0 %v513
        %v640 = vpop.f32.mrb[0].mxu0
        %v641 = vadd.f32 0.0, %v640
        %v642 = vpop.f32.mrb[0].mxu0
        %643 = vmatprep.mubr.f32.mxu0 0.0
        %644 = vmatmul.mubr.f32.gmra.mrb[0].mxu0 %v516
        %v645 = vpop.f32.mrb[0].mxu0
        %v646 = vadd.f32 0.0, %v645
        %v647 = vpop.f32.mrb[0].mxu0
        %648 = vmatprep.mubr.f32.mxu0 0.0
        %649 = vmatmul.mubr.f32.gmra.mrb[0].mxu0 %v519
        %v650 = vpop.f32.mrb[0].mxu0
        %v651 = vadd.f32 0.0, %v650
        %v652 = vpop.f32.mrb[0].mxu0
        %653 = vmatprep.mubr.f32.mxu0 0.0
        %654 = vmatmul.mubr.f32.gmra.mrb[0].mxu0 %v522
        %v655 = vpop.f32.mrb[0].mxu0
        %v656 = vadd.f32 0.0, %v655
        %v657 = vpop.f32.mrb[0].mxu0
        %658 = vmatprep.mubr.f32.mxu0 0.0
        %659 = vmatmul.mubr.f32.gmra.mrb[0].mxu0 %v525
        %v660 = vpop.f32.mrb[0].mxu0
        %v661 = vadd.f32 0.0, %v660
        %v662 = vpop.f32.mrb[0].mxu0
        %663 = vmatprep.mubr.f32.mxu0 0.0
        %664 = vmatmul.mubr.f32.gmra.mrb[0].mxu0 %v528
        %v665 = vpop.f32.mrb[0].mxu0
        %v666 = vadd.f32 0.0, %v665
        %v667 = vpop.f32.mrb[0].mxu0
        %668 = vmatprep.mubr.f32.mxu0 0.0
        %669 = vmatmul.mubr.f32.gmra.mrb[0].mxu0 %v531
        %v670 = vpop.f32.mrb[0].mxu0
        %v671 = vadd.f32 0.0, %v670
        %v672 = vpop.f32.mrb[0].mxu0
        %673 = vmatprep.mubr.f32.mxu0 0.0
        %674 = vmatmul.mubr.f32.gmra.mrb[0].mxu0 %v534
        %v675 = vpop.f32.mrb[0].mxu0
        %v676 = vadd.f32 0.0, %v675
        %v677 = vpop.f32.mrb[0].mxu0
        %678 = vmatprep.mubr.f32.mxu0 0.0
        %679 = vmatmul.mubr.f32.gmra.mrb[0].mxu0 %v537
        %v680 = vpop.f32.mrb[0].mxu0
        %v681 = vadd.f32 0.0, %v680
        %v682 = vpop.f32.mrb[0].mxu0
        %683 = vdwg.mxu0
        %v684 = vlaneseq
        %v685 = vand.u32 %v684, 127
        %vm686 = vcmp.lt.s32.totalorder %v685, 64
        %v687 = vsel %vm686, %v606, -1e+30
        %v688 = vsel %vm686, %v611, -1e+30
        %v689 = vsel %vm686, %v616, -1e+30
        %v690 = vsel %vm686, %v621, -1e+30
        %v691 = vsel %vm686, %v626, -1e+30
        %v692 = vsel %vm686, %v631, -1e+30
        %v693 = vsel %vm686, %v636, -1e+30
        %v694 = vsel %vm686, %v641, -1e+30
        %v695 = vsel %vm686, %v646, -1e+30
        %v696 = vsel %vm686, %v651, -1e+30
        %v697 = vsel %vm686, %v656, -1e+30
        %v698 = vsel %vm686, %v661, -1e+30
        %v699 = vsel %vm686, %v666, -1e+30
        %v700 = vsel %vm686, %v671, -1e+30
        %v701 = vsel %vm686, %v676, -1e+30
        %v702 = vsel %vm686, %v681, -1e+30
        %703 = vmax.xlane.f32.xlu0 %v687
        %v704 = vpop.xlane.xlu0 %703
        %705 = vmax.xlane.f32.xlu0 %v688
        %v706 = vpop.xlane.xlu0 %705
        %707 = vmax.xlane.f32.xlu0 %v689
        %v708 = vpop.xlane.xlu0 %707
        %709 = vmax.xlane.f32.xlu0 %v690
        %v710 = vpop.xlane.xlu0 %709
        %711 = vmax.xlane.f32.xlu0 %v691
        %v712 = vpop.xlane.xlu0 %711
        %713 = vmax.xlane.f32.xlu0 %v692
        %v714 = vpop.xlane.xlu0 %713
        %715 = vmax.xlane.f32.xlu0 %v693
        %v716 = vpop.xlane.xlu0 %715
        %717 = vmax.xlane.f32.xlu0 %v694
        %v718 = vpop.xlane.xlu0 %717
        %719 = vmax.xlane.f32.xlu0 %v695
        %v720 = vpop.xlane.xlu0 %719
        %721 = vmax.xlane.f32.xlu0 %v696
        %v722 = vpop.xlane.xlu0 %721
        %723 = vmax.xlane.f32.xlu0 %v697
        %v724 = vpop.xlane.xlu0 %723
        %725 = vmax.xlane.f32.xlu0 %v698
        %v726 = vpop.xlane.xlu0 %725
        %727 = vmax.xlane.f32.xlu0 %v699
        %v728 = vpop.xlane.xlu0 %727
        %729 = vmax.xlane.f32.xlu0 %v700
        %v730 = vpop.xlane.xlu0 %729
        %731 = vmax.xlane.f32.xlu0 %v701
        %v732 = vpop.xlane.xlu0 %731
        %733 = vmax.xlane.f32.xlu0 %v702
        %v734 = vpop.xlane.xlu0 %733
        %v735 = vsub.f32 %v687, %v704
        %v736 = vsub.f32 %v688, %v706
        %v737 = vsub.f32 %v689, %v708
        %v738 = vsub.f32 %v690, %v710
        %v739 = vsub.f32 %v691, %v712
        %v740 = vsub.f32 %v692, %v714
        %v741 = vsub.f32 %v693, %v716
        %v742 = vsub.f32 %v694, %v718
        %v743 = vsub.f32 %v695, %v720
        %v744 = vsub.f32 %v696, %v722
        %v745 = vsub.f32 %v697, %v724
        %v746 = vsub.f32 %v698, %v726
        %v747 = vsub.f32 %v699, %v728
        %v748 = vsub.f32 %v700, %v730
        %v749 = vsub.f32 %v701, %v732
        %v750 = vsub.f32 %v702, %v734
        %v751 = vmul.f32 %v735, 1.442695
        %v752 = vpow.pop %v751
        %v753 = vmul.f32 %v736, 1.442695
        %v754 = vpow.pop %v753
        %v755 = vmul.f32 %v737, 1.442695
        %v756 = vpow.pop %v755
        %v757 = vmul.f32 %v738, 1.442695
        %v758 = vpow.pop %v757
        %v759 = vmul.f32 %v739, 1.442695
        %v760 = vpow.pop %v759
        %v761 = vmul.f32 %v740, 1.442695
        %v762 = vpow.pop %v761
        %v763 = vmul.f32 %v741, 1.442695
        %v764 = vpow.pop %v763
        %v765 = vmul.f32 %v742, 1.442695
        %v766 = vpow.pop %v765
        %v767 = vmul.f32 %v743, 1.442695
        %v768 = vpow.pop %v767
        %v769 = vmul.f32 %v744, 1.442695
        %v770 = vpow.pop %v769
        %v771 = vmul.f32 %v745, 1.442695
        %v772 = vpow.pop %v771
        %v773 = vmul.f32 %v746, 1.442695
        %v774 = vpow.pop %v773
        %v775 = vmul.f32 %v747, 1.442695
        %v776 = vpow.pop %v775
        %v777 = vmul.f32 %v748, 1.442695
        %v778 = vpow.pop %v777
        %v779 = vmul.f32 %v749, 1.442695
        %v780 = vpow.pop %v779
        %v781 = vmul.f32 %v750, 1.442695
        %v782 = vpow.pop %v781
        %783 = vadd.xlane.f32.xlu0 %v752
        %v784 = vpop.xlane.xlu0 %783
        %785 = vadd.xlane.f32.xlu0 %v754
        %v786 = vpop.xlane.xlu0 %785
        %787 = vadd.xlane.f32.xlu0 %v756
        %v788 = vpop.xlane.xlu0 %787
        %789 = vadd.xlane.f32.xlu0 %v758
        %v790 = vpop.xlane.xlu0 %789
        %791 = vadd.xlane.f32.xlu0 %v760
        %v792 = vpop.xlane.xlu0 %791
        %793 = vadd.xlane.f32.xlu0 %v762
        %v794 = vpop.xlane.xlu0 %793
        %795 = vadd.xlane.f32.xlu0 %v764
        %v796 = vpop.xlane.xlu0 %795
        %797 = vadd.xlane.f32.xlu0 %v766
        %v798 = vpop.xlane.xlu0 %797
        %799 = vadd.xlane.f32.xlu0 %v768
        %v800 = vpop.xlane.xlu0 %799
        %801 = vadd.xlane.f32.xlu0 %v770
        %v802 = vpop.xlane.xlu0 %801
        %803 = vadd.xlane.f32.xlu0 %v772
        %v804 = vpop.xlane.xlu0 %803
        %805 = vadd.xlane.f32.xlu0 %v774
        %v806 = vpop.xlane.xlu0 %805
        %807 = vadd.xlane.f32.xlu0 %v776
        %v808 = vpop.xlane.xlu0 %807
        %809 = vadd.xlane.f32.xlu0 %v778
        %v810 = vpop.xlane.xlu0 %809
        %811 = vadd.xlane.f32.xlu0 %v780
        %v812 = vpop.xlane.xlu0 %811
        %813 = vadd.xlane.f32.xlu0 %v782
        %v814 = vpop.xlane.xlu0 %813
        %v815 = vrcp.pop %v784
        %v816 = vrcp.pop %v786
        %v817 = vrcp.pop %v788
        %v818 = vrcp.pop %v790
        %v819 = vrcp.pop %v792
        %v820 = vrcp.pop %v794
        %v821 = vrcp.pop %v796
        %v822 = vrcp.pop %v798
        %v823 = vrcp.pop %v800
        %v824 = vrcp.pop %v802
        %v825 = vrcp.pop %v804
        %v826 = vrcp.pop %v806
        %v827 = vrcp.pop %v808
        %v828 = vrcp.pop %v810
        %v829 = vrcp.pop %v812
        %v830 = vrcp.pop %v814
        %v831 = vmul.f32 %v752, %v815
        %v832 = vmul.f32 %v754, %v816
        %v833 = vmul.f32 %v756, %v817
        %v834 = vmul.f32 %v758, %v818
        %v835 = vmul.f32 %v760, %v819
        %v836 = vmul.f32 %v762, %v820
        %v837 = vmul.f32 %v764, %v821
        %v838 = vmul.f32 %v766, %v822
        %v839 = vmul.f32 %v768, %v823
        %v840 = vmul.f32 %v770, %v824
        %v841 = vmul.f32 %v772, %v825
        %v842 = vmul.f32 %v774, %v826
        %v843 = vmul.f32 %v776, %v827
        %v844 = vmul.f32 %v778, %v828
        %v845 = vmul.f32 %v780, %v829
        %v846 = vmul.f32 %v782, %v830
        %847 = vmatprep.subr.mxu0 0.0
        %848 = vmatpush1.xpose.msra.mxu0 %v831
        %849 = vmatprep.subr.mxu0 0.0
        %850 = vmatpush1.xpose.msra.mxu0 %v832
        %851 = vmatprep.subr.mxu0 0.0
        %852 = vmatpush1.xpose.msra.mxu0 %v833
        %853 = vmatprep.subr.mxu0 0.0
        %854 = vmatpush1.xpose.msra.mxu0 %v834
        %855 = vmatprep.subr.mxu0 0.0
        %856 = vmatpush1.xpose.msra.mxu0 %v835
        %857 = vmatprep.subr.mxu0 0.0
        %858 = vmatpush1.xpose.msra.mxu0 %v836
        %859 = vmatprep.subr.mxu0 0.0
        %860 = vmatpush1.xpose.msra.mxu0 %v837
        %861 = vmatprep.subr.mxu0 0.0
        %862 = vmatpush1.xpose.msra.mxu0 %v838
        %863 = vmatprep.subr.mxu0 0.0
        %864 = vmatpush1.xpose.msra.mxu0 %v839
        %865 = vmatprep.subr.mxu0 0.0
        %866 = vmatpush1.xpose.msra.mxu0 %v840
        %867 = vmatprep.subr.mxu0 0.0
        %868 = vmatpush1.xpose.msra.mxu0 %v841
        %869 = vmatprep.subr.mxu0 0.0
        %870 = vmatpush1.xpose.msra.mxu0 %v842
        %871 = vmatprep.subr.mxu0 0.0
        %872 = vmatpush1.xpose.msra.mxu0 %v843
        %873 = vmatprep.subr.mxu0 0.0
        %874 = vmatpush1.xpose.msra.mxu0 %v844
        %875 = vmatprep.subr.mxu0 0.0
        %876 = vmatpush1.xpose.msra.mxu0 %v845
        %877 = vmatprep.subr.mxu0 0.0
        %878 = vmatpush1.xpose.msra.mxu0 %v846
        %879 = vmatprep.subr.mxu0 0.0
        %880 = vmatpush1.xpose.msra.mxu0 0.0
        %881 = vmatprep.subr.mxu0 0.0
        %882 = vmatpush1.xpose.msra.mxu0 0.0
        %883 = vmatprep.subr.mxu0 0.0
        %884 = vmatpush1.xpose.msra.mxu0 0.0
        %885 = vmatprep.subr.mxu0 0.0
        %886 = vmatpush1.xpose.msra.mxu0 0.0
        %887 = vmatprep.subr.mxu0 0.0
        %888 = vmatpush1.xpose.msra.mxu0 0.0
        %889 = vmatprep.subr.mxu0 0.0
        %890 = vmatpush1.xpose.msra.mxu0 0.0
        %891 = vmatprep.subr.mxu0 0.0
        %892 = vmatpush1.xpose.msra.mxu0 0.0
        %893 = vmatprep.subr.mxu0 0.0
        %894 = vmatpush1.xpose.msra.mxu0 0.0
        %895 = vmatprep.subr.mxu0 0.0
        %896 = vmatpush1.xpose.msra.mxu0 0.0
        %897 = vmatprep.subr.mxu0 0.0
        %898 = vmatpush1.xpose.msra.mxu0 0.0
        %899 = vmatprep.subr.mxu0 0.0
        %900 = vmatpush1.xpose.msra.mxu0 0.0
        %901 = vmatprep.subr.mxu0 0.0
        %902 = vmatpush1.xpose.msra.mxu0 0.0
        %903 = vmatprep.subr.mxu0 0.0
        %904 = vmatpush1.xpose.msra.mxu0 0.0
        %905 = vmatprep.subr.mxu0 0.0
        %906 = vmatpush1.xpose.msra.mxu0 0.0
        %907 = vmatprep.subr.mxu0 0.0
        %908 = vmatpush1.xpose.msra.mxu0 0.0
        %909 = vmatprep.subr.mxu0 0.0
        %910 = vmatpush1.xpose.msra.mxu0 0.0
        %911 = vmatprep.mubr.f32.mxu0 0.0
        %912 = vmatmul.mubr.f32.gmra.mrb[0].mxu0 %v457
        %v913 = vpop.f32.mrb[0].mxu0
        %v914 = vadd.f32 0.0, %v913
        %v915 = vpop.f32.mrb[0].mxu0
        %916 = vdwg.mxu0
        %917 = vst [vmem:[%s177] sm:$0xff] %v914
        %s918 = sand.u32 %s107, 1
        %s919 = scalar_lea.sflag [#allocation4], %s918
        %s920 = sand.u32 %s107, 1
        %s921 = smul.addr %s920, 8
        %s922 = scalar_lea.vmem [#allocation3], %s921
        // Predicated region
        $region37: #{tpu_custom_call.1} parent=31 // pred_check
          %p923 = pneg %p117
        $region38: #{tpu_custom_call.1} parent=31 // pred_check_branch
          %925 = sbr.rel (%p923) target = $region40
        $region39: #{tpu_custom_call.1} parent=31 // pred_region
          %s927 = ssub.s32 128, 128
          %928 = vsyncadd %s919, %s927
          %s929 = smul.addr %s21, 4
          %s930 = sadd.s32 %s22, %s929
          %s931 = smul.addr %s930, 128
          %s932 = scalar_lea.hbm %s3, %s931
          %s934 = sshll.u32 %s922, 4
          %s935 = int_to_ptr.vmem [resolvable:$true] %s934
          %937 = dma.vmem_to_hbm [thread:$0]  %s935, 128, %s932, %s919
        $region40: #{tpu_custom_call.1} parent=31 // pred_fallthru
          _
      $region32: #{tpu_custom_call.1} parent=5 // pred_fallthru
        _
      %p938 = scmp.le.s32.totalorder 2, %s12
      // Predicated region
      $region41: #{tpu_custom_call.1} parent=5 // pred_check
        %p939 = pneg %p938
      $region42: #{tpu_custom_call.1} parent=5 // pred_check_branch
        %941 = sbr.rel (%p939) target = $region44
      $region43: #{tpu_custom_call.1} parent=5 // pred_region
        %s942 = ssub.s32 %s12, 2
        // Predicated region
        $region45: #{tpu_custom_call.1} parent=43 // pred_check
          %p943 = pneg %p123
        $region46: #{tpu_custom_call.1} parent=43 // pred_check_branch
          %945 = sbr.rel (%p943) target = $region48
        $region47: #{tpu_custom_call.1} parent=43 // pred_region
          %s946 = sand.u32 %s108, 1
          %s947 = scalar_lea.sflag [#allocation4], %s946
          %s948 = sand.u32 %s108, 1
          %s949 = smul.addr %s948, 8
          %s950 = scalar_lea.vmem [#allocation3], %s949
          %951 = dma.done %s947, 128
        $region48: #{tpu_custom_call.1} parent=43 // pred_fallthru
          _
      $region44: #{tpu_custom_call.1} parent=5 // pred_fallthru
        _
    $region6: #{tpu_custom_call.1} parent=1 // loop_footer
      %s16 = sadd.s32 1, %s12
    $region7: #{tpu_custom_call.1} parent=1 // loop_footer_branch
      %11 = sbr.rel target = $region3
    $region8: #{tpu_custom_call.1} parent=1 // loop_exit
      _
    %952 = vsyncpa [#allocation4], 1
    %s953 = scalar_lea.sflag [#allocation4], 1
    %954 = vsyncpa %s953, 1

</llo_original>
